<compile_context>
chip_gen: v6e
topology: v6e:2x2x1
jax: 0.10.0
libtpu: 0.0.40
codegen_flags: <defaults>
</compile_context>

<pallas_src>
import jax
import jax.numpy as jnp
from jax.experimental import pallas as pl
from jax.experimental.pallas import tpu as pltpu


def _cond_lstm_kernel(x0_ref, vflat_ref,
                      wenc_ref, benc_ref,
                      wih_ref, whh_ref, bias_ref,
                      wfc_ref, bfc_ref,
                      out_ref):
    """Full forward pass of ConditionalLSTM for one (small) batch.

    x0_ref   : (B, Dx)
    vflat_ref: (T*B, Dv)   time-major flattened sequence: row t*B + b <-> (t, b)
    wenc_ref : (Dx, H)   benc_ref: (1, H)
    wih_ref  : (Dv, 4H)  whh_ref : (H, 4H)  bias_ref: (1, 4H)
               gate column order [i, f, o, g]; bias = b_ih + b_hh
    wfc_ref  : (H, Dout) bfc_ref : (1, Dout)
    out_ref  : (B, Dout)
    """
    H = whh_ref.shape[0]
    B = x0_ref.shape[0]
    TB = vflat_ref.shape[0]
    T = TB // B

    # --- (1) hoisted input projection: one batched MXU dot for all T steps,
    #         bias folded in.  Removes one dot + one add from the serial chain.
    proj = (
        jnp.dot(vflat_ref[...], wih_ref[...], preferred_element_type=jnp.float32)
        + bias_ref[...]
    )  # (T*B, 4H), lives in vregs at these sizes

    # --- encoder: h0 = tanh(x0 @ Wenc^T + benc), c0 = 0 ---
    h = jnp.tanh(
        jnp.dot(x0_ref[...], wenc_ref[...], preferred_element_type=jnp.float32)
        + benc_ref[...]
    )
    c = jnp.zeros_like(h)

    w_hh = whh_ref[...]

    # --- LSTM recurrence: static Python unroll (T is a trace-time constant),
    #     all slices static -> no dynamic sublane extraction per step.
    for t in range(T):
        p_t = proj[t * B:(t + 1) * B, :]                          # (B, 4H), static slice
        gates = (jnp.dot(h, w_hh, preferred_element_type=jnp.float32)
                 + p_t)                                           # (B, 4H)
        sig = jax.nn.sigmoid(gates[:, 0:3 * H])                   # one EUP call
        i_g = sig[:, 0 * H:1 * H]
        f_g = sig[:, 1 * H:2 * H]
        o_g = sig[:, 2 * H:3 * H]
        g_g = jnp.tanh(gates[:, 3 * H:4 * H])                     # one EUP call
        c = f_g * c + i_g * g_g
        h = o_g * jnp.tanh(c)

    # --- final fc on last time-step hidden state ---
    out_ref[...] = (
        jnp.dot(h, wfc_ref[...], preferred_element_type=jnp.float32)
        + bfc_ref[...]
    )


def conditional_lstm_forward(x0, V, kparams):
    """x0: (B, Dx), V: (B, T, Dv) batch_first.  kparams: kernel-layout params
    (gate order [i, f, o, g], weights pre-transposed).  Returns (B, Dout)."""
    B, _ = x0.shape
    _, T, Dv = V.shape
    Dout = kparams["w_fc_t"].shape[1]

    # Time-major flatten so the hoisted projection is one 2-D matmul and each
    # step reads a contiguous (B, 4H) slab.  Negligible at these sizes.
    v_flat = jnp.transpose(V, (1, 0, 2)).reshape(T * B, Dv)

    vmem = pltpu.MemorySpace.VMEM
    spec = lambda: pl.BlockSpec(memory_space=vmem)

    out = pl.pallas_call(
        _cond_lstm_kernel,
        out_shape=jax.ShapeDtypeStruct((B, Dout), jnp.float32),
        in_specs=[spec() for _ in range(9)],
        out_specs=spec(),
    )(
        x0, v_flat,
        kparams["w_enc_t"], kparams["b_enc"],
        kparams["w_ih_t"], kparams["w_hh_t"], kparams["bias"],
        kparams["w_fc_t"], kparams["b_fc"],
    )
    return out


def init_params(key, hidden_size, input_size_x=2, input_size_v=2, output_size=2):
    """PyTorch-layout params (gate order [i, f, g, o]), uniform(-1/sqrt(fan), 1/sqrt(fan))."""
    ks = jax.random.split(key, 8)
    H = hidden_size

    def u(k, shape, fan):
        bound = 1.0 / jnp.sqrt(jnp.float32(fan))
        return jax.random.uniform(k, shape, jnp.float32, -bound, bound)

    w_enc_t = u(ks[0], (input_size_x, H), input_size_x)     # encoder Linear(Dx, H)
    b_enc = u(ks[1], (1, H), input_size_x)
    w_ih_t = u(ks[2], (input_size_v, 4 * H), H)             # LSTM, gates [i, f, g, o]
    w_hh_t = u(ks[3], (H, 4 * H), H)
    b_ih = u(ks[4], (1, 4 * H), H)
    b_hh = u(ks[5], (1, 4 * H), H)
    w_fc_t = u(ks[6], (H, output_size), H)                  # fc Linear(H, Dout)
    b_fc = u(ks[7], (1, output_size), H)

    return {
        "w_enc_t": w_enc_t, "b_enc": b_enc,
        "w_ih_t": w_ih_t, "w_hh_t": w_hh_t, "bias": b_ih + b_hh,
        "w_fc_t": w_fc_t, "b_fc": b_fc,
    }


def prepare_kernel_params(params, hidden_size):
    """Permute gate columns [i, f, g, o] -> [i, f, o, g] for the kernel
    (applied consistently to w_ih_t, w_hh_t and the combined bias)."""
    H = hidden_size

    def reorder_cols(w):
        return jnp.concatenate(
            [w[:, 0:2 * H], w[:, 3 * H:4 * H], w[:, 2 * H:3 * H]], axis=1)

    return {
        "w_enc_t": params["w_enc_t"], "b_enc": params["b_enc"],
        "w_ih_t": reorder_cols(params["w_ih_t"]),
        "w_hh_t": reorder_cols(params["w_hh_t"]),
        "bias": reorder_cols(params["bias"]),
        "w_fc_t": params["w_fc_t"], "b_fc": params["b_fc"],
    }


def reference_forward(x0, V, params):
    """Pure-JAX reference matching PyTorch semantics (PyTorch gate order [i, f, g, o])."""
    H = params["w_hh_t"].shape[0]
    h = jnp.tanh(x0 @ params["w_enc_t"] + params["b_enc"])
    c = jnp.zeros_like(h)
    T = V.shape[1]
    for t in range(T):
        gates = V[:, t, :] @ params["w_ih_t"] + h @ params["w_hh_t"] + params["bias"]
        i_g = jax.nn.sigmoid(gates[:, 0 * H:1 * H])
        f_g = jax.nn.sigmoid(gates[:, 1 * H:2 * H])
        g_g = jnp.tanh(gates[:, 2 * H:3 * H])
        o_g = jax.nn.sigmoid(gates[:, 3 * H:4 * H])
        c = f_g * c + i_g * g_g
        h = o_g * jnp.tanh(c)
    return h @ params["w_fc_t"] + params["b_fc"]


if __name__ == "__main__":
    B, T, H = 2, 8, 32
    Dx, Dv, Dout = 2, 2, 2

    key = jax.random.PRNGKey(0)
    k_param, k_x, k_v = jax.random.split(key, 3)

    params = init_params(k_param, hidden_size=H,
                         input_size_x=Dx, input_size_v=Dv, output_size=Dout)
    kparams = prepare_kernel_params(params, H)

    x0 = jax.random.normal(k_x, (B, Dx), jnp.float32)
    V = jax.random.normal(k_v, (B, T, Dv), jnp.float32)

    out = conditional_lstm_forward(x0, V, kparams)
    out = jax.block_until_ready(out)

    ref = reference_forward(x0, V, params)
    assert out.shape == (B, Dout)
    assert jnp.allclose(out, ref, atol=1e-5, rtol=1e-5), (out, ref)

    print("KERNEL_OK")
</pallas_src>

<mosaic_0001>
module attributes {stable_mosaic.version = 11 : i64} {
  func.func @_cond_lstm_kernel(%arg0: memref<2x2xf32, #tpu.memory_space<vmem>>, %arg1: memref<16x2xf32, #tpu.memory_space<vmem>>, %arg2: memref<2x32xf32, #tpu.memory_space<vmem>>, %arg3: memref<1x32xf32, #tpu.memory_space<vmem>>, %arg4: memref<2x128xf32, #tpu.memory_space<vmem>>, %arg5: memref<32x128xf32, #tpu.memory_space<vmem>>, %arg6: memref<1x128xf32, #tpu.memory_space<vmem>>, %arg7: memref<32x2xf32, #tpu.memory_space<vmem>>, %arg8: memref<1x2xf32, #tpu.memory_space<vmem>>, %arg9: memref<2x2xf32, #tpu.memory_space<vmem>>) attributes {dimension_semantics = [], scalar_prefetch = 0 : i64, scratch_operands = 0 : i64, tpu.core_type = #tpu.core_type<tc>} {
    %c0 = arith.constant 0 : index
    %c0_0 = arith.constant 0 : index
    %0 = vector.load %arg1[%c0, %c0_0] : memref<16x2xf32, #tpu.memory_space<vmem>>, vector<16x2xf32>
    %c0_1 = arith.constant 0 : index
    %c0_2 = arith.constant 0 : index
    %1 = vector.load %arg4[%c0_1, %c0_2] : memref<2x128xf32, #tpu.memory_space<vmem>>, vector<2x128xf32>
    %cst = arith.constant dense<0.000000e+00> : vector<16x128xf32>
    %2 = tpu.matmul %0, %1, %cst {dimension_numbers = #tpu.dot_dimension_numbers<[1], [0], [0], [1], [0, 0, 1, 1], [], []>} : vector<16x2xf32>, vector<2x128xf32>, vector<16x128xf32> -> vector<16x128xf32>
    %c0_3 = arith.constant 0 : index
    %c0_4 = arith.constant 0 : index
    %3 = vector.load %arg6[%c0_3, %c0_4] : memref<1x128xf32, #tpu.memory_space<vmem>>, vector<1x128xf32>
    %4 = vector.broadcast %3 : vector<1x128xf32> to vector<16x128xf32>
    %5 = arith.addf %2, %4 : vector<16x128xf32>
    %c0_5 = arith.constant 0 : index
    %c0_6 = arith.constant 0 : index
    %6 = vector.load %arg0[%c0_5, %c0_6] : memref<2x2xf32, #tpu.memory_space<vmem>>, vector<2x2xf32>
    %c0_7 = arith.constant 0 : index
    %c0_8 = arith.constant 0 : index
    %7 = vector.load %arg2[%c0_7, %c0_8] : memref<2x32xf32, #tpu.memory_space<vmem>>, vector<2x32xf32>
    %cst_9 = arith.constant dense<0.000000e+00> : vector<2x32xf32>
    %8 = tpu.matmul %6, %7, %cst_9 {dimension_numbers = #tpu.dot_dimension_numbers<[1], [0], [0], [1], [0, 0, 1, 1], [], []>} : vector<2x2xf32>, vector<2x32xf32>, vector<2x32xf32> -> vector<2x32xf32>
    %c0_10 = arith.constant 0 : index
    %c0_11 = arith.constant 0 : index
    %9 = vector.load %arg3[%c0_10, %c0_11] : memref<1x32xf32, #tpu.memory_space<vmem>>, vector<1x32xf32>
    %10 = vector.broadcast %9 : vector<1x32xf32> to vector<2x32xf32>
    %11 = arith.addf %8, %10 : vector<2x32xf32>
    %12 = math.tanh %11 : vector<2x32xf32>
    %cst_12 = arith.constant 0.000000e+00 : f32
    %13 = vector.broadcast %cst_12 : f32 to vector<2x32xf32>
    %c0_13 = arith.constant 0 : index
    %c0_14 = arith.constant 0 : index
    %14 = vector.load %arg5[%c0_13, %c0_14] : memref<32x128xf32, #tpu.memory_space<vmem>>, vector<32x128xf32>
    %15 = vector.extract_strided_slice %5 {offsets = [0, 0], sizes = [2, 128], strides = [1, 1]} : vector<16x128xf32> to vector<2x128xf32>
    %cst_15 = arith.constant dense<0.000000e+00> : vector<2x128xf32>
    %16 = tpu.matmul %12, %14, %cst_15 {dimension_numbers = #tpu.dot_dimension_numbers<[1], [0], [0], [1], [0, 0, 1, 1], [], []>} : vector<2x32xf32>, vector<32x128xf32>, vector<2x128xf32> -> vector<2x128xf32>
    %17 = arith.addf %16, %15 : vector<2x128xf32>
    %18 = vector.extract_strided_slice %17 {offsets = [0, 0], sizes = [2, 96], strides = [1, 1]} : vector<2x128xf32> to vector<2x96xf32>
    %19 = arith.negf %18 : vector<2x96xf32>
    %20 = math.exp %19 : vector<2x96xf32>
    %cst_16 = arith.constant 1.000000e+00 : f32
    %21 = vector.broadcast %cst_16 : f32 to vector<2x96xf32>
    %22 = arith.addf %21, %20 : vector<2x96xf32>
    %23 = arith.divf %21, %22 : vector<2x96xf32>
    %24 = vector.extract_strided_slice %23 {offsets = [0, 0], sizes = [2, 32], strides = [1, 1]} : vector<2x96xf32> to vector<2x32xf32>
    %25 = vector.extract_strided_slice %23 {offsets = [0, 32], sizes = [2, 32], strides = [1, 1]} : vector<2x96xf32> to vector<2x32xf32>
    %26 = vector.extract_strided_slice %23 {offsets = [0, 64], sizes = [2, 32], strides = [1, 1]} : vector<2x96xf32> to vector<2x32xf32>
    %27 = vector.extract_strided_slice %17 {offsets = [0, 96], sizes = [2, 32], strides = [1, 1]} : vector<2x128xf32> to vector<2x32xf32>
    %28 = math.tanh %27 : vector<2x32xf32>
    %29 = arith.mulf %25, %13 : vector<2x32xf32>
    %30 = arith.mulf %24, %28 : vector<2x32xf32>
    %31 = arith.addf %29, %30 : vector<2x32xf32>
    %32 = math.tanh %31 : vector<2x32xf32>
    %33 = arith.mulf %26, %32 : vector<2x32xf32>
    %34 = vector.extract_strided_slice %5 {offsets = [2, 0], sizes = [2, 128], strides = [1, 1]} : vector<16x128xf32> to vector<2x128xf32>
    %cst_17 = arith.constant dense<0.000000e+00> : vector<2x128xf32>
    %35 = tpu.matmul %33, %14, %cst_17 {dimension_numbers = #tpu.dot_dimension_numbers<[1], [0], [0], [1], [0, 0, 1, 1], [], []>} : vector<2x32xf32>, vector<32x128xf32>, vector<2x128xf32> -> vector<2x128xf32>
    %36 = arith.addf %35, %34 : vector<2x128xf32>
    %37 = vector.extract_strided_slice %36 {offsets = [0, 0], sizes = [2, 96], strides = [1, 1]} : vector<2x128xf32> to vector<2x96xf32>
    %38 = arith.negf %37 : vector<2x96xf32>
    %39 = math.exp %38 : vector<2x96xf32>
    %cst_18 = arith.constant 1.000000e+00 : f32
    %40 = vector.broadcast %cst_18 : f32 to vector<2x96xf32>
    %41 = arith.addf %40, %39 : vector<2x96xf32>
    %42 = arith.divf %40, %41 : vector<2x96xf32>
    %43 = vector.extract_strided_slice %42 {offsets = [0, 0], sizes = [2, 32], strides = [1, 1]} : vector<2x96xf32> to vector<2x32xf32>
    %44 = vector.extract_strided_slice %42 {offsets = [0, 32], sizes = [2, 32], strides = [1, 1]} : vector<2x96xf32> to vector<2x32xf32>
    %45 = vector.extract_strided_slice %42 {offsets = [0, 64], sizes = [2, 32], strides = [1, 1]} : vector<2x96xf32> to vector<2x32xf32>
    %46 = vector.extract_strided_slice %36 {offsets = [0, 96], sizes = [2, 32], strides = [1, 1]} : vector<2x128xf32> to vector<2x32xf32>
    %47 = math.tanh %46 : vector<2x32xf32>
    %48 = arith.mulf %44, %31 : vector<2x32xf32>
    %49 = arith.mulf %43, %47 : vector<2x32xf32>
    %50 = arith.addf %48, %49 : vector<2x32xf32>
    %51 = math.tanh %50 : vector<2x32xf32>
    %52 = arith.mulf %45, %51 : vector<2x32xf32>
    %53 = vector.extract_strided_slice %5 {offsets = [4, 0], sizes = [2, 128], strides = [1, 1]} : vector<16x128xf32> to vector<2x128xf32>
    %cst_19 = arith.constant dense<0.000000e+00> : vector<2x128xf32>
    %54 = tpu.matmul %52, %14, %cst_19 {dimension_numbers = #tpu.dot_dimension_numbers<[1], [0], [0], [1], [0, 0, 1, 1], [], []>} : vector<2x32xf32>, vector<32x128xf32>, vector<2x128xf32> -> vector<2x128xf32>
    %55 = arith.addf %54, %53 : vector<2x128xf32>
    %56 = vector.extract_strided_slice %55 {offsets = [0, 0], sizes = [2, 96], strides = [1, 1]} : vector<2x128xf32> to vector<2x96xf32>
    %57 = arith.negf %56 : vector<2x96xf32>
    %58 = math.exp %57 : vector<2x96xf32>
    %cst_20 = arith.constant 1.000000e+00 : f32
    %59 = vector.broadcast %cst_20 : f32 to vector<2x96xf32>
    %60 = arith.addf %59, %58 : vector<2x96xf32>
    %61 = arith.divf %59, %60 : vector<2x96xf32>
    %62 = vector.extract_strided_slice %61 {offsets = [0, 0], sizes = [2, 32], strides = [1, 1]} : vector<2x96xf32> to vector<2x32xf32>
    %63 = vector.extract_strided_slice %61 {offsets = [0, 32], sizes = [2, 32], strides = [1, 1]} : vector<2x96xf32> to vector<2x32xf32>
    %64 = vector.extract_strided_slice %61 {offsets = [0, 64], sizes = [2, 32], strides = [1, 1]} : vector<2x96xf32> to vector<2x32xf32>
    %65 = vector.extract_strided_slice %55 {offsets = [0, 96], sizes = [2, 32], strides = [1, 1]} : vector<2x128xf32> to vector<2x32xf32>
    %66 = math.tanh %65 : vector<2x32xf32>
    %67 = arith.mulf %63, %50 : vector<2x32xf32>
    %68 = arith.mulf %62, %66 : vector<2x32xf32>
    %69 = arith.addf %67, %68 : vector<2x32xf32>
    %70 = math.tanh %69 : vector<2x32xf32>
    %71 = arith.mulf %64, %70 : vector<2x32xf32>
    %72 = vector.extract_strided_slice %5 {offsets = [6, 0], sizes = [2, 128], strides = [1, 1]} : vector<16x128xf32> to vector<2x128xf32>
    %cst_21 = arith.constant dense<0.000000e+00> : vector<2x128xf32>
    %73 = tpu.matmul %71, %14, %cst_21 {dimension_numbers = #tpu.dot_dimension_numbers<[1], [0], [0], [1], [0, 0, 1, 1], [], []>} : vector<2x32xf32>, vector<32x128xf32>, vector<2x128xf32> -> vector<2x128xf32>
    %74 = arith.addf %73, %72 : vector<2x128xf32>
    %75 = vector.extract_strided_slice %74 {offsets = [0, 0], sizes = [2, 96], strides = [1, 1]} : vector<2x128xf32> to vector<2x96xf32>
    %76 = arith.negf %75 : vector<2x96xf32>
    %77 = math.exp %76 : vector<2x96xf32>
    %cst_22 = arith.constant 1.000000e+00 : f32
    %78 = vector.broadcast %cst_22 : f32 to vector<2x96xf32>
    %79 = arith.addf %78, %77 : vector<2x96xf32>
    %80 = arith.divf %78, %79 : vector<2x96xf32>
    %81 = vector.extract_strided_slice %80 {offsets = [0, 0], sizes = [2, 32], strides = [1, 1]} : vector<2x96xf32> to vector<2x32xf32>
    %82 = vector.extract_strided_slice %80 {offsets = [0, 32], sizes = [2, 32], strides = [1, 1]} : vector<2x96xf32> to vector<2x32xf32>
    %83 = vector.extract_strided_slice %80 {offsets = [0, 64], sizes = [2, 32], strides = [1, 1]} : vector<2x96xf32> to vector<2x32xf32>
    %84 = vector.extract_strided_slice %74 {offsets = [0, 96], sizes = [2, 32], strides = [1, 1]} : vector<2x128xf32> to vector<2x32xf32>
    %85 = math.tanh %84 : vector<2x32xf32>
    %86 = arith.mulf %82, %69 : vector<2x32xf32>
    %87 = arith.mulf %81, %85 : vector<2x32xf32>
    %88 = arith.addf %86, %87 : vector<2x32xf32>
    %89 = math.tanh %88 : vector<2x32xf32>
    %90 = arith.mulf %83, %89 : vector<2x32xf32>
    %91 = vector.extract_strided_slice %5 {offsets = [8, 0], sizes = [2, 128], strides = [1, 1]} : vector<16x128xf32> to vector<2x128xf32>
    %cst_23 = arith.constant dense<0.000000e+00> : vector<2x128xf32>
    %92 = tpu.matmul %90, %14, %cst_23 {dimension_numbers = #tpu.dot_dimension_numbers<[1], [0], [0], [1], [0, 0, 1, 1], [], []>} : vector<2x32xf32>, vector<32x128xf32>, vector<2x128xf32> -> vector<2x128xf32>
    %93 = arith.addf %92, %91 : vector<2x128xf32>
    %94 = vector.extract_strided_slice %93 {offsets = [0, 0], sizes = [2, 96], strides = [1, 1]} : vector<2x128xf32> to vector<2x96xf32>
    %95 = arith.negf %94 : vector<2x96xf32>
    %96 = math.exp %95 : vector<2x96xf32>
    %cst_24 = arith.constant 1.000000e+00 : f32
    %97 = vector.broadcast %cst_24 : f32 to vector<2x96xf32>
    %98 = arith.addf %97, %96 : vector<2x96xf32>
    %99 = arith.divf %97, %98 : vector<2x96xf32>
    %100 = vector.extract_strided_slice %99 {offsets = [0, 0], sizes = [2, 32], strides = [1, 1]} : vector<2x96xf32> to vector<2x32xf32>
    %101 = vector.extract_strided_slice %99 {offsets = [0, 32], sizes = [2, 32], strides = [1, 1]} : vector<2x96xf32> to vector<2x32xf32>
    %102 = vector.extract_strided_slice %99 {offsets = [0, 64], sizes = [2, 32], strides = [1, 1]} : vector<2x96xf32> to vector<2x32xf32>
    %103 = vector.extract_strided_slice %93 {offsets = [0, 96], sizes = [2, 32], strides = [1, 1]} : vector<2x128xf32> to vector<2x32xf32>
    %104 = math.tanh %103 : vector<2x32xf32>
    %105 = arith.mulf %101, %88 : vector<2x32xf32>
    %106 = arith.mulf %100, %104 : vector<2x32xf32>
    %107 = arith.addf %105, %106 : vector<2x32xf32>
    %108 = math.tanh %107 : vector<2x32xf32>
    %109 = arith.mulf %102, %108 : vector<2x32xf32>
    %110 = vector.extract_strided_slice %5 {offsets = [10, 0], sizes = [2, 128], strides = [1, 1]} : vector<16x128xf32> to vector<2x128xf32>
    %cst_25 = arith.constant dense<0.000000e+00> : vector<2x128xf32>
    %111 = tpu.matmul %109, %14, %cst_25 {dimension_numbers = #tpu.dot_dimension_numbers<[1], [0], [0], [1], [0, 0, 1, 1], [], []>} : vector<2x32xf32>, vector<32x128xf32>, vector<2x128xf32> -> vector<2x128xf32>
    %112 = arith.addf %111, %110 : vector<2x128xf32>
    %113 = vector.extract_strided_slice %112 {offsets = [0, 0], sizes = [2, 96], strides = [1, 1]} : vector<2x128xf32> to vector<2x96xf32>
    %114 = arith.negf %113 : vector<2x96xf32>
    %115 = math.exp %114 : vector<2x96xf32>
    %cst_26 = arith.constant 1.000000e+00 : f32
    %116 = vector.broadcast %cst_26 : f32 to vector<2x96xf32>
    %117 = arith.addf %116, %115 : vector<2x96xf32>
    %118 = arith.divf %116, %117 : vector<2x96xf32>
    %119 = vector.extract_strided_slice %118 {offsets = [0, 0], sizes = [2, 32], strides = [1, 1]} : vector<2x96xf32> to vector<2x32xf32>
    %120 = vector.extract_strided_slice %118 {offsets = [0, 32], sizes = [2, 32], strides = [1, 1]} : vector<2x96xf32> to vector<2x32xf32>
    %121 = vector.extract_strided_slice %118 {offsets = [0, 64], sizes = [2, 32], strides = [1, 1]} : vector<2x96xf32> to vector<2x32xf32>
    %122 = vector.extract_strided_slice %112 {offsets = [0, 96], sizes = [2, 32], strides = [1, 1]} : vector<2x128xf32> to vector<2x32xf32>
    %123 = math.tanh %122 : vector<2x32xf32>
    %124 = arith.mulf %120, %107 : vector<2x32xf32>
    %125 = arith.mulf %119, %123 : vector<2x32xf32>
    %126 = arith.addf %124, %125 : vector<2x32xf32>
    %127 = math.tanh %126 : vector<2x32xf32>
    %128 = arith.mulf %121, %127 : vector<2x32xf32>
    %129 = vector.extract_strided_slice %5 {offsets = [12, 0], sizes = [2, 128], strides = [1, 1]} : vector<16x128xf32> to vector<2x128xf32>
    %cst_27 = arith.constant dense<0.000000e+00> : vector<2x128xf32>
    %130 = tpu.matmul %128, %14, %cst_27 {dimension_numbers = #tpu.dot_dimension_numbers<[1], [0], [0], [1], [0, 0, 1, 1], [], []>} : vector<2x32xf32>, vector<32x128xf32>, vector<2x128xf32> -> vector<2x128xf32>
    %131 = arith.addf %130, %129 : vector<2x128xf32>
    %132 = vector.extract_strided_slice %131 {offsets = [0, 0], sizes = [2, 96], strides = [1, 1]} : vector<2x128xf32> to vector<2x96xf32>
    %133 = arith.negf %132 : vector<2x96xf32>
    %134 = math.exp %133 : vector<2x96xf32>
    %cst_28 = arith.constant 1.000000e+00 : f32
    %135 = vector.broadcast %cst_28 : f32 to vector<2x96xf32>
    %136 = arith.addf %135, %134 : vector<2x96xf32>
    %137 = arith.divf %135, %136 : vector<2x96xf32>
    %138 = vector.extract_strided_slice %137 {offsets = [0, 0], sizes = [2, 32], strides = [1, 1]} : vector<2x96xf32> to vector<2x32xf32>
    %139 = vector.extract_strided_slice %137 {offsets = [0, 32], sizes = [2, 32], strides = [1, 1]} : vector<2x96xf32> to vector<2x32xf32>
    %140 = vector.extract_strided_slice %137 {offsets = [0, 64], sizes = [2, 32], strides = [1, 1]} : vector<2x96xf32> to vector<2x32xf32>
    %141 = vector.extract_strided_slice %131 {offsets = [0, 96], sizes = [2, 32], strides = [1, 1]} : vector<2x128xf32> to vector<2x32xf32>
    %142 = math.tanh %141 : vector<2x32xf32>
    %143 = arith.mulf %139, %126 : vector<2x32xf32>
    %144 = arith.mulf %138, %142 : vector<2x32xf32>
    %145 = arith.addf %143, %144 : vector<2x32xf32>
    %146 = math.tanh %145 : vector<2x32xf32>
    %147 = arith.mulf %140, %146 : vector<2x32xf32>
    %148 = vector.extract_strided_slice %5 {offsets = [14, 0], sizes = [2, 128], strides = [1, 1]} : vector<16x128xf32> to vector<2x128xf32>
    %cst_29 = arith.constant dense<0.000000e+00> : vector<2x128xf32>
    %149 = tpu.matmul %147, %14, %cst_29 {dimension_numbers = #tpu.dot_dimension_numbers<[1], [0], [0], [1], [0, 0, 1, 1], [], []>} : vector<2x32xf32>, vector<32x128xf32>, vector<2x128xf32> -> vector<2x128xf32>
    %150 = arith.addf %149, %148 : vector<2x128xf32>
    %151 = vector.extract_strided_slice %150 {offsets = [0, 0], sizes = [2, 96], strides = [1, 1]} : vector<2x128xf32> to vector<2x96xf32>
    %152 = arith.negf %151 : vector<2x96xf32>
    %153 = math.exp %152 : vector<2x96xf32>
    %cst_30 = arith.constant 1.000000e+00 : f32
    %154 = vector.broadcast %cst_30 : f32 to vector<2x96xf32>
    %155 = arith.addf %154, %153 : vector<2x96xf32>
    %156 = arith.divf %154, %155 : vector<2x96xf32>
    %157 = vector.extract_strided_slice %156 {offsets = [0, 0], sizes = [2, 32], strides = [1, 1]} : vector<2x96xf32> to vector<2x32xf32>
    %158 = vector.extract_strided_slice %156 {offsets = [0, 32], sizes = [2, 32], strides = [1, 1]} : vector<2x96xf32> to vector<2x32xf32>
    %159 = vector.extract_strided_slice %156 {offsets = [0, 64], sizes = [2, 32], strides = [1, 1]} : vector<2x96xf32> to vector<2x32xf32>
    %160 = vector.extract_strided_slice %150 {offsets = [0, 96], sizes = [2, 32], strides = [1, 1]} : vector<2x128xf32> to vector<2x32xf32>
    %161 = math.tanh %160 : vector<2x32xf32>
    %162 = arith.mulf %158, %145 : vector<2x32xf32>
    %163 = arith.mulf %157, %161 : vector<2x32xf32>
    %164 = arith.addf %162, %163 : vector<2x32xf32>
    %165 = math.tanh %164 : vector<2x32xf32>
    %166 = arith.mulf %159, %165 : vector<2x32xf32>
    %c0_31 = arith.constant 0 : index
    %c0_32 = arith.constant 0 : index
    %167 = vector.load %arg7[%c0_31, %c0_32] : memref<32x2xf32, #tpu.memory_space<vmem>>, vector<32x2xf32>
    %cst_33 = arith.constant dense<0.000000e+00> : vector<2x2xf32>
    %168 = tpu.matmul %166, %167, %cst_33 {dimension_numbers = #tpu.dot_dimension_numbers<[1], [0], [0], [1], [0, 0, 1, 1], [], []>} : vector<2x32xf32>, vector<32x2xf32>, vector<2x2xf32> -> vector<2x2xf32>
    %c0_34 = arith.constant 0 : index
    %c0_35 = arith.constant 0 : index
    %169 = vector.load %arg8[%c0_34, %c0_35] : memref<1x2xf32, #tpu.memory_space<vmem>>, vector<1x2xf32>
    %170 = vector.broadcast %169 : vector<1x2xf32> to vector<2x2xf32>
    %171 = arith.addf %168, %170 : vector<2x2xf32>
    %c0_36 = arith.constant 0 : index
    %c0_37 = arith.constant 0 : index
    %172 = vector.load %arg9[%c0_36, %c0_37] : memref<2x2xf32, #tpu.memory_space<vmem>>, vector<2x2xf32>
    tpu.vector_store %arg9[%c0_36, %c0_37], %171 {strides = array<i32>} : memref<2x2xf32, #tpu.memory_space<vmem>>, vector<2x2xf32>,
    return
  }
}

</mosaic_0001>

<llo_original>
// kernel: tpu_custom_call.1
$region0: #{tpu_custom_call.1}
  #allocation0 [shape = 'u32[]', space=smem, size = 0x4, offset = 0x4, fixed_abs, tag = 'smem constant byte address 0x4 - core index']
  #allocation1 [shape = 'u32[144,128]{1,0:T(1,128)}', space=vmem, size = 0x12000, scoped, tag = 'internal scratch']
  %s0 = inlined_call_operand.vmem [shape: f32[2,2], index: 0, kind: input, shape index: {}]
  %s1 = inlined_call_operand.vmem [shape: f32[16,2], index: 1, kind: input, shape index: {}]
  %s2 = inlined_call_operand.vmem [shape: f32[2,32], index: 2, kind: input, shape index: {}]
  %s3 = inlined_call_operand.vmem [shape: f32[1,32], index: 3, kind: input, shape index: {}]
  %s4 = inlined_call_operand.vmem [shape: f32[2,128], index: 4, kind: input, shape index: {}]
  %s5 = inlined_call_operand.vmem [shape: f32[32,128], index: 5, kind: input, shape index: {}]
  %s6 = inlined_call_operand.vmem [shape: f32[1,128], index: 6, kind: input, shape index: {}]
  %s7 = inlined_call_operand.vmem [shape: f32[32,2], index: 7, kind: input, shape index: {}]
  %s8 = inlined_call_operand.vmem [shape: f32[1,2], index: 8, kind: input, shape index: {}]
  %s9 = inlined_call_operand.hbm [shape: f32[2,2], index: 9, kind: output, shape index: {}]
  %s10 = sld [smem:[#allocation0]]
  $region46: #{tpu_custom_call.1} parent=0
    _
  %s12 = ssub.s32 1, %s10
  %s13 = scalar_select 0, %s12, %s10
  $region1: #{tpu_custom_call.1} parent=0
    #allocation2 [shape = 'u8[1024]{0}', space=vmem, size = 0x400, scoped, tag = 'output window, operand 0, single buffered']
    #allocation3 [shape = 's32[1]{0}', space=sflag, size = 0x4, scoped, tag = 'scoped memory for tpu_custom_call.1']
    %14 = vsyncpa [#allocation3], 0
    // Predicated region
    $region2: #{tpu_custom_call.1} parent=1 // pred_check
      _
    $region3: #{tpu_custom_call.1} parent=1 // pred_check_branch
      %16 = sbr.rel (0) target = $region5
    $region4: #{tpu_custom_call.1} parent=1 // pred_region
      _
    $region5: #{tpu_custom_call.1} parent=1 // pred_fallthru
      _
    // Predicated region
    $region6: #{tpu_custom_call.1} parent=1 // pred_check
      _
    $region7: #{tpu_custom_call.1} parent=1 // pred_check_branch
      %18 = sbr.rel (0) target = $region9
    $region8: #{tpu_custom_call.1} parent=1 // pred_region
      _
    $region9: #{tpu_custom_call.1} parent=1 // pred_fallthru
      _
    // Predicated region
    $region10: #{tpu_custom_call.1} parent=1 // pred_check
      _
    $region11: #{tpu_custom_call.1} parent=1 // pred_check_branch
      %20 = sbr.rel (0) target = $region13
    $region12: #{tpu_custom_call.1} parent=1 // pred_region
      _
    $region13: #{tpu_custom_call.1} parent=1 // pred_fallthru
      _
    // Predicated region
    $region14: #{tpu_custom_call.1} parent=1 // pred_check
      _
    $region15: #{tpu_custom_call.1} parent=1 // pred_check_branch
      %22 = sbr.rel (0) target = $region17
    $region16: #{tpu_custom_call.1} parent=1 // pred_region
      _
    $region17: #{tpu_custom_call.1} parent=1 // pred_fallthru
      _
    // Predicated region
    $region18: #{tpu_custom_call.1} parent=1 // pred_check
      _
    $region19: #{tpu_custom_call.1} parent=1 // pred_check_branch
      %24 = sbr.rel (0) target = $region21
    $region20: #{tpu_custom_call.1} parent=1 // pred_region
      _
    $region21: #{tpu_custom_call.1} parent=1 // pred_fallthru
      _
    // Predicated region
    $region22: #{tpu_custom_call.1} parent=1 // pred_check
      _
    $region23: #{tpu_custom_call.1} parent=1 // pred_check_branch
      %26 = sbr.rel (0) target = $region25
    $region24: #{tpu_custom_call.1} parent=1 // pred_region
      _
    $region25: #{tpu_custom_call.1} parent=1 // pred_fallthru
      _
    // Predicated region
    $region26: #{tpu_custom_call.1} parent=1 // pred_check
      _
    $region27: #{tpu_custom_call.1} parent=1 // pred_check_branch
      %28 = sbr.rel (0) target = $region29
    $region28: #{tpu_custom_call.1} parent=1 // pred_region
      _
    $region29: #{tpu_custom_call.1} parent=1 // pred_fallthru
      _
    // Predicated region
    $region30: #{tpu_custom_call.1} parent=1 // pred_check
      _
    $region31: #{tpu_custom_call.1} parent=1 // pred_check_branch
      %30 = sbr.rel (0) target = $region33
    $region32: #{tpu_custom_call.1} parent=1 // pred_region
      _
    $region33: #{tpu_custom_call.1} parent=1 // pred_fallthru
      _
    // Predicated region
    $region34: #{tpu_custom_call.1} parent=1 // pred_check
      _
    $region35: #{tpu_custom_call.1} parent=1 // pred_check_branch
      %32 = sbr.rel (0) target = $region37
    $region36: #{tpu_custom_call.1} parent=1 // pred_region
      _
    $region37: #{tpu_custom_call.1} parent=1 // pred_fallthru
      _
    %v33 = vld [vmem:[%s1] sm:$0xff]
    %v34 = vld [vmem:[%s1 + $0x8] sm:$0xff]
    %v35 = vld [vmem:[%s4] sm:$0x3]
    %v36 = vld [vmem:[%s6] sm:$0x1]
    %v38 = vlaneseq
    %v39 = vshrl.u32 %v38, 7
    %v40 = vsub.s32 0, %v39
    %v41 = vrot.slane %v36, %v40
    %vm43 = vcmask 15360
    %v45 = vsel %vm43, %v33, 0
    %v48 = vsel %vm43, %v34, 0
    %vm50 = vcmask 1041408
    %v52 = vsel %vm50, %v35, 0
    %54 = vmatprep.subr.mxu0 0.0
    %55 = vmatpush1.msra.mxu0 0.0
    %56 = vmatprep.subr.mxu0 0.0
    %57 = vmatpush1.msra.mxu0 0.0
    %58 = vmatprep.subr.mxu0 0.0
    %59 = vmatpush1.msra.mxu0 0.0
    %60 = vmatprep.subr.mxu0 0.0
    %61 = vmatpush1.msra.mxu0 0.0
    %62 = vmatprep.subr.mxu0 0.0
    %63 = vmatpush1.msra.mxu0 0.0
    %64 = vmatprep.subr.mxu0 0.0
    %65 = vmatpush1.msra.mxu0 0.0
    %66 = vmatprep.subr.mxu0 0.0
    %67 = vmatpush1.msra.mxu0 0.0
    %68 = vmatprep.subr.mxu0 0.0
    %69 = vmatpush1.msra.mxu0 0.0
    %70 = vmatprep.subr.mxu0 0.0
    %71 = vmatpush1.msra.mxu0 0.0
    %72 = vmatprep.subr.mxu0 0.0
    %73 = vmatpush1.msra.mxu0 0.0
    %74 = vmatprep.subr.mxu0 0.0
    %75 = vmatpush1.msra.mxu0 0.0
    %76 = vmatprep.subr.mxu0 0.0
    %77 = vmatpush1.msra.mxu0 0.0
    %78 = vmatprep.subr.mxu0 0.0
    %79 = vmatpush1.msra.mxu0 0.0
    %80 = vmatprep.subr.mxu0 0.0
    %81 = vmatpush1.msra.mxu0 0.0
    %82 = vmatprep.subr.mxu0 0.0
    %83 = vmatpush1.msra.mxu0 0.0
    %84 = vmatprep.subr.mxu0 0.0
    %85 = vmatpush1.msra.mxu0 %v52
    %86 = vmatprep.subr.mxu0 0.0
    %87 = vmatpush2.msra.mxu0 0.0
    %88 = vmatprep.subr.mxu0 0.0
    %89 = vmatpush2.msra.mxu0 0.0
    %90 = vmatprep.subr.mxu0 0.0
    %91 = vmatpush2.msra.mxu0 0.0
    %92 = vmatprep.subr.mxu0 0.0
    %93 = vmatpush2.msra.mxu0 0.0
    %94 = vmatprep.subr.mxu0 0.0
    %95 = vmatpush2.msra.mxu0 0.0
    %96 = vmatprep.subr.mxu0 0.0
    %97 = vmatpush2.msra.mxu0 0.0
    %98 = vmatprep.subr.mxu0 0.0
    %99 = vmatpush2.msra.mxu0 0.0
    %100 = vmatprep.subr.mxu0 0.0
    %101 = vmatpush2.msra.mxu0 0.0
    %102 = vmatprep.subr.mxu0 0.0
    %103 = vmatpush2.msra.mxu0 0.0
    %104 = vmatprep.subr.mxu0 0.0
    %105 = vmatpush2.msra.mxu0 0.0
    %106 = vmatprep.subr.mxu0 0.0
    %107 = vmatpush2.msra.mxu0 0.0
    %108 = vmatprep.subr.mxu0 0.0
    %109 = vmatpush2.msra.mxu0 0.0
    %110 = vmatprep.subr.mxu0 0.0
    %111 = vmatpush2.msra.mxu0 0.0
    %112 = vmatprep.subr.mxu0 0.0
    %113 = vmatpush2.msra.mxu0 0.0
    %114 = vmatprep.subr.mxu0 0.0
    %115 = vmatpush2.msra.mxu0 0.0
    %116 = vmatprep.subr.mxu0 0.0
    %117 = vmatpush2.msra.mxu0 0.0
    %118 = vmatprep.mubr.f32.mxu0 0.0
    %119 = vmatmul.mubr.f32.gmra.mxu0 %v45
    %v120 = vpop.f32.mrf.mxu0
    %v121 = vadd.f32 %v41, %v120
    %v122 = vpop.f32.mrf.mxu0
    %123 = vmatprep.mubr.f32.mxu0 0.0
    %124 = vmatmul.mubr.f32.gmra.mxu0 %v48
    %v125 = vpop.f32.mrf.mxu0
    %v126 = vadd.f32 %v41, %v125
    %v127 = vpop.f32.mrf.mxu0
    %128 = vdwg.mxu0
    %v129 = vld [vmem:[%s0] sm:$0x3]
    %v130 = vld [vmem:[%s2] sm:$0x3]
    %v131 = vld [vmem:[%s3] sm:$0x1]
    %v133 = vlaneseq
    %v134 = vshrl.u32 %v133, 7
    %v135 = vsub.s32 0, %v134
    %v136 = vrot.slane %v131, %v135
    %v139 = vsel %vm43, %v129, 0
    %v142 = vsel %vm50, %v130, 0
    %144 = vmatprep.subr.mxu0 0.0
    %145 = vmatpush1.msra.mxu0 0.0
    %146 = vmatprep.subr.mxu0 0.0
    %147 = vmatpush1.msra.mxu0 0.0
    %148 = vmatprep.subr.mxu0 0.0
    %149 = vmatpush1.msra.mxu0 0.0
    %150 = vmatprep.subr.mxu0 0.0
    %151 = vmatpush1.msra.mxu0 0.0
    %152 = vmatprep.subr.mxu0 0.0
    %153 = vmatpush1.msra.mxu0 0.0
    %154 = vmatprep.subr.mxu0 0.0
    %155 = vmatpush1.msra.mxu0 0.0
    %156 = vmatprep.subr.mxu0 0.0
    %157 = vmatpush1.msra.mxu0 0.0
    %158 = vmatprep.subr.mxu0 0.0
    %159 = vmatpush1.msra.mxu0 0.0
    %160 = vmatprep.subr.mxu0 0.0
    %161 = vmatpush1.msra.mxu0 0.0
    %162 = vmatprep.subr.mxu0 0.0
    %163 = vmatpush1.msra.mxu0 0.0
    %164 = vmatprep.subr.mxu0 0.0
    %165 = vmatpush1.msra.mxu0 0.0
    %166 = vmatprep.subr.mxu0 0.0
    %167 = vmatpush1.msra.mxu0 0.0
    %168 = vmatprep.subr.mxu0 0.0
    %169 = vmatpush1.msra.mxu0 0.0
    %170 = vmatprep.subr.mxu0 0.0
    %171 = vmatpush1.msra.mxu0 0.0
    %172 = vmatprep.subr.mxu0 0.0
    %173 = vmatpush1.msra.mxu0 0.0
    %174 = vmatprep.subr.mxu0 0.0
    %175 = vmatpush1.msra.mxu0 %v142
    %176 = vmatprep.subr.mxu0 0.0
    %177 = vmatpush2.msra.mxu0 0.0
    %178 = vmatprep.subr.mxu0 0.0
    %179 = vmatpush2.msra.mxu0 0.0
    %180 = vmatprep.subr.mxu0 0.0
    %181 = vmatpush2.msra.mxu0 0.0
    %182 = vmatprep.subr.mxu0 0.0
    %183 = vmatpush2.msra.mxu0 0.0
    %184 = vmatprep.subr.mxu0 0.0
    %185 = vmatpush2.msra.mxu0 0.0
    %186 = vmatprep.subr.mxu0 0.0
    %187 = vmatpush2.msra.mxu0 0.0
    %188 = vmatprep.subr.mxu0 0.0
    %189 = vmatpush2.msra.mxu0 0.0
    %190 = vmatprep.subr.mxu0 0.0
    %191 = vmatpush2.msra.mxu0 0.0
    %192 = vmatprep.subr.mxu0 0.0
    %193 = vmatpush2.msra.mxu0 0.0
    %194 = vmatprep.subr.mxu0 0.0
    %195 = vmatpush2.msra.mxu0 0.0
    %196 = vmatprep.subr.mxu0 0.0
    %197 = vmatpush2.msra.mxu0 0.0
    %198 = vmatprep.subr.mxu0 0.0
    %199 = vmatpush2.msra.mxu0 0.0
    %200 = vmatprep.subr.mxu0 0.0
    %201 = vmatpush2.msra.mxu0 0.0
    %202 = vmatprep.subr.mxu0 0.0
    %203 = vmatpush2.msra.mxu0 0.0
    %204 = vmatprep.subr.mxu0 0.0
    %205 = vmatpush2.msra.mxu0 0.0
    %206 = vmatprep.subr.mxu0 0.0
    %207 = vmatpush2.msra.mxu0 0.0
    %208 = vmatprep.mubr.f32.mxu0 0.0
    %209 = vmatmul.mubr.f32.gmra.mxu0 %v139
    %v210 = vpop.f32.mrf.mxu0
    %v211 = vadd.f32 %v136, %v210
    %v212 = vpop.f32.mrf.mxu0
    %213 = vdwg.mxu0
    %v214 = vtanh.pop %v211
    %v215 = vld [vmem:[%s5] sm:$0xff]
    %v216 = vld [vmem:[%s5 + $0x8] sm:$0xff]
    %v217 = vld [vmem:[%s5 + $0x10] sm:$0xff]
    %v218 = vld [vmem:[%s5 + $0x18] sm:$0xff]
    %vm219 = vcmask 261120
    %v221 = vsel %vm219, %v214, 0
    %223 = vmatprep.subr.mxu0 0.0
    %224 = vmatpush1.msra.mxu0 0.0
    %225 = vmatprep.subr.mxu0 0.0
    %226 = vmatpush1.msra.mxu0 0.0
    %227 = vmatprep.subr.mxu0 0.0
    %228 = vmatpush1.msra.mxu0 0.0
    %229 = vmatprep.subr.mxu0 0.0
    %230 = vmatpush1.msra.mxu0 0.0
    %231 = vmatprep.subr.mxu0 0.0
    %232 = vmatpush1.msra.mxu0 0.0
    %233 = vmatprep.subr.mxu0 0.0
    %234 = vmatpush1.msra.mxu0 0.0
    %235 = vmatprep.subr.mxu0 0.0
    %236 = vmatpush1.msra.mxu0 0.0
    %237 = vmatprep.subr.mxu0 0.0
    %238 = vmatpush1.msra.mxu0 0.0
    %239 = vmatprep.subr.mxu0 0.0
    %240 = vmatpush1.msra.mxu0 0.0
    %241 = vmatprep.subr.mxu0 0.0
    %242 = vmatpush1.msra.mxu0 0.0
    %243 = vmatprep.subr.mxu0 0.0
    %244 = vmatpush1.msra.mxu0 0.0
    %245 = vmatprep.subr.mxu0 0.0
    %246 = vmatpush1.msra.mxu0 0.0
    %247 = vmatprep.subr.mxu0 0.0
    %248 = vmatpush1.msra.mxu0 %v218
    %249 = vmatprep.subr.mxu0 0.0
    %250 = vmatpush1.msra.mxu0 %v217
    %251 = vmatprep.subr.mxu0 0.0
    %252 = vmatpush1.msra.mxu0 %v216
    %253 = vmatprep.subr.mxu0 0.0
    %254 = vmatpush1.msra.mxu0 %v215
    %255 = vmatprep.subr.mxu0 0.0
    %256 = vmatpush2.msra.mxu0 0.0
    %257 = vmatprep.subr.mxu0 0.0
    %258 = vmatpush2.msra.mxu0 0.0
    %259 = vmatprep.subr.mxu0 0.0
    %260 = vmatpush2.msra.mxu0 0.0
    %261 = vmatprep.subr.mxu0 0.0
    %262 = vmatpush2.msra.mxu0 0.0
    %263 = vmatprep.subr.mxu0 0.0
    %264 = vmatpush2.msra.mxu0 0.0
    %265 = vmatprep.subr.mxu0 0.0
    %266 = vmatpush2.msra.mxu0 0.0
    %267 = vmatprep.subr.mxu0 0.0
    %268 = vmatpush2.msra.mxu0 0.0
    %269 = vmatprep.subr.mxu0 0.0
    %270 = vmatpush2.msra.mxu0 0.0
    %271 = vmatprep.subr.mxu0 0.0
    %272 = vmatpush2.msra.mxu0 0.0
    %273 = vmatprep.subr.mxu0 0.0
    %274 = vmatpush2.msra.mxu0 0.0
    %275 = vmatprep.subr.mxu0 0.0
    %276 = vmatpush2.msra.mxu0 0.0
    %277 = vmatprep.subr.mxu0 0.0
    %278 = vmatpush2.msra.mxu0 0.0
    %279 = vmatprep.subr.mxu0 0.0
    %280 = vmatpush2.msra.mxu0 0.0
    %281 = vmatprep.subr.mxu0 0.0
    %282 = vmatpush2.msra.mxu0 0.0
    %283 = vmatprep.subr.mxu0 0.0
    %284 = vmatpush2.msra.mxu0 0.0
    %285 = vmatprep.subr.mxu0 0.0
    %286 = vmatpush2.msra.mxu0 0.0
    %287 = vmatprep.mubr.f32.mxu0 0.0
    %288 = vmatmul.mubr.f32.gmra.mxu0 %v221
    %v289 = vpop.f32.mrf.mxu0
    %v290 = vadd.f32 %v121, %v289
    %v291 = vpop.f32.mrf.mxu0
    %292 = vdwg.mxu0
    %v293 = vxor.u32 %v290, 2147483648
    %v294 = vmul.f32 %v293, 1.442695
    %v295 = vpow.pop %v294
    %v296 = vadd.f32 %v295, 1.0
    %v297 = vrcp.pop %v296
    %v298 = vmul.f32 1.0, %v297
    %v299 = vtanh.pop %v290
    %v300 = vmul.f32 %v298, 0.0
    %302 = vrot.lane.b32.xlu0 %v299, 32
    %v303 = vpop.permute.xlu0 %302
    %v305 = vmul.f32 %v298, %v303
    %307 = vrot.lane.b32.xlu0 %v305, 32
    %v308 = vpop.permute.xlu0 %307
    %v310 = vadd.f32 %v300, %v308
    %v311 = vtanh.pop %v310
    %313 = vrot.lane.b32.xlu0 %v311, 32
    %v314 = vpop.permute.xlu0 %313
    %v316 = vmul.f32 %v298, %v314
    %318 = vrot.lane.b32.xlu0 %v316, 64
    %v319 = vpop.permute.xlu0 %318
    %v321 = vrot.slane %v121, 2
    %v323 = vsel %vm219, %v319, 0
    %325 = vmatprep.subr.mxu0 0.0
    %326 = vmatpush1.msra.mxu0 0.0
    %327 = vmatprep.subr.mxu0 0.0
    %328 = vmatpush1.msra.mxu0 0.0
    %329 = vmatprep.subr.mxu0 0.0
    %330 = vmatpush1.msra.mxu0 0.0
    %331 = vmatprep.subr.mxu0 0.0
    %332 = vmatpush1.msra.mxu0 0.0
    %333 = vmatprep.subr.mxu0 0.0
    %334 = vmatpush1.msra.mxu0 0.0
    %335 = vmatprep.subr.mxu0 0.0
    %336 = vmatpush1.msra.mxu0 0.0
    %337 = vmatprep.subr.mxu0 0.0
    %338 = vmatpush1.msra.mxu0 0.0
    %339 = vmatprep.subr.mxu0 0.0
    %340 = vmatpush1.msra.mxu0 0.0
    %341 = vmatprep.subr.mxu0 0.0
    %342 = vmatpush1.msra.mxu0 0.0
    %343 = vmatprep.subr.mxu0 0.0
    %344 = vmatpush1.msra.mxu0 0.0
    %345 = vmatprep.subr.mxu0 0.0
    %346 = vmatpush1.msra.mxu0 0.0
    %347 = vmatprep.subr.mxu0 0.0
    %348 = vmatpush1.msra.mxu0 0.0
    %349 = vmatprep.subr.mxu0 0.0
    %350 = vmatpush1.msra.mxu0 %v218
    %351 = vmatprep.subr.mxu0 0.0
    %352 = vmatpush1.msra.mxu0 %v217
    %353 = vmatprep.subr.mxu0 0.0
    %354 = vmatpush1.msra.mxu0 %v216
    %355 = vmatprep.subr.mxu0 0.0
    %356 = vmatpush1.msra.mxu0 %v215
    %357 = vmatprep.subr.mxu0 0.0
    %358 = vmatpush2.msra.mxu0 0.0
    %359 = vmatprep.subr.mxu0 0.0
    %360 = vmatpush2.msra.mxu0 0.0
    %361 = vmatprep.subr.mxu0 0.0
    %362 = vmatpush2.msra.mxu0 0.0
    %363 = vmatprep.subr.mxu0 0.0
    %364 = vmatpush2.msra.mxu0 0.0
    %365 = vmatprep.subr.mxu0 0.0
    %366 = vmatpush2.msra.mxu0 0.0
    %367 = vmatprep.subr.mxu0 0.0
    %368 = vmatpush2.msra.mxu0 0.0
    %369 = vmatprep.subr.mxu0 0.0
    %370 = vmatpush2.msra.mxu0 0.0
    %371 = vmatprep.subr.mxu0 0.0
    %372 = vmatpush2.msra.mxu0 0.0
    %373 = vmatprep.subr.mxu0 0.0
    %374 = vmatpush2.msra.mxu0 0.0
    %375 = vmatprep.subr.mxu0 0.0
    %376 = vmatpush2.msra.mxu0 0.0
    %377 = vmatprep.subr.mxu0 0.0
    %378 = vmatpush2.msra.mxu0 0.0
    %379 = vmatprep.subr.mxu0 0.0
    %380 = vmatpush2.msra.mxu0 0.0
    %381 = vmatprep.subr.mxu0 0.0
    %382 = vmatpush2.msra.mxu0 0.0
    %383 = vmatprep.subr.mxu0 0.0
    %384 = vmatpush2.msra.mxu0 0.0
    %385 = vmatprep.subr.mxu0 0.0
    %386 = vmatpush2.msra.mxu0 0.0
    %387 = vmatprep.subr.mxu0 0.0
    %388 = vmatpush2.msra.mxu0 0.0
    %389 = vmatprep.mubr.f32.mxu0 0.0
    %390 = vmatmul.mubr.f32.gmra.mxu0 %v323
    %v391 = vpop.f32.mrf.mxu0
    %v392 = vadd.f32 %v321, %v391
    %v393 = vpop.f32.mrf.mxu0
    %394 = vdwg.mxu0
    %v395 = vxor.u32 %v392, 2147483648
    %v396 = vmul.f32 %v395, 1.442695
    %v397 = vpow.pop %v396
    %v398 = vadd.f32 %v397, 1.0
    %v399 = vrcp.pop %v398
    %v400 = vmul.f32 1.0, %v399
    %v401 = vtanh.pop %v392
    %v402 = vmul.f32 %v400, %v310
    %404 = vrot.lane.b32.xlu0 %v401, 32
    %v405 = vpop.permute.xlu0 %404
    %v407 = vmul.f32 %v400, %v405
    %409 = vrot.lane.b32.xlu0 %v407, 32
    %v410 = vpop.permute.xlu0 %409
    %v412 = vadd.f32 %v402, %v410
    %v413 = vtanh.pop %v412
    %415 = vrot.lane.b32.xlu0 %v413, 32
    %v416 = vpop.permute.xlu0 %415
    %v418 = vmul.f32 %v400, %v416
    %420 = vrot.lane.b32.xlu0 %v418, 64
    %v421 = vpop.permute.xlu0 %420
    %v422 = vrot.slane %v121, 4
    %v424 = vsel %vm219, %v421, 0
    %426 = vmatprep.subr.mxu0 0.0
    %427 = vmatpush1.msra.mxu0 0.0
    %428 = vmatprep.subr.mxu0 0.0
    %429 = vmatpush1.msra.mxu0 0.0
    %430 = vmatprep.subr.mxu0 0.0
    %431 = vmatpush1.msra.mxu0 0.0
    %432 = vmatprep.subr.mxu0 0.0
    %433 = vmatpush1.msra.mxu0 0.0
    %434 = vmatprep.subr.mxu0 0.0
    %435 = vmatpush1.msra.mxu0 0.0
    %436 = vmatprep.subr.mxu0 0.0
    %437 = vmatpush1.msra.mxu0 0.0
    %438 = vmatprep.subr.mxu0 0.0
    %439 = vmatpush1.msra.mxu0 0.0
    %440 = vmatprep.subr.mxu0 0.0
    %441 = vmatpush1.msra.mxu0 0.0
    %442 = vmatprep.subr.mxu0 0.0
    %443 = vmatpush1.msra.mxu0 0.0
    %444 = vmatprep.subr.mxu0 0.0
    %445 = vmatpush1.msra.mxu0 0.0
    %446 = vmatprep.subr.mxu0 0.0
    %447 = vmatpush1.msra.mxu0 0.0
    %448 = vmatprep.subr.mxu0 0.0
    %449 = vmatpush1.msra.mxu0 0.0
    %450 = vmatprep.subr.mxu0 0.0
    %451 = vmatpush1.msra.mxu0 %v218
    %452 = vmatprep.subr.mxu0 0.0
    %453 = vmatpush1.msra.mxu0 %v217
    %454 = vmatprep.subr.mxu0 0.0
    %455 = vmatpush1.msra.mxu0 %v216
    %456 = vmatprep.subr.mxu0 0.0
    %457 = vmatpush1.msra.mxu0 %v215
    %458 = vmatprep.subr.mxu0 0.0
    %459 = vmatpush2.msra.mxu0 0.0
    %460 = vmatprep.subr.mxu0 0.0
    %461 = vmatpush2.msra.mxu0 0.0
    %462 = vmatprep.subr.mxu0 0.0
    %463 = vmatpush2.msra.mxu0 0.0
    %464 = vmatprep.subr.mxu0 0.0
    %465 = vmatpush2.msra.mxu0 0.0
    %466 = vmatprep.subr.mxu0 0.0
    %467 = vmatpush2.msra.mxu0 0.0
    %468 = vmatprep.subr.mxu0 0.0
    %469 = vmatpush2.msra.mxu0 0.0
    %470 = vmatprep.subr.mxu0 0.0
    %471 = vmatpush2.msra.mxu0 0.0
    %472 = vmatprep.subr.mxu0 0.0
    %473 = vmatpush2.msra.mxu0 0.0
    %474 = vmatprep.subr.mxu0 0.0
    %475 = vmatpush2.msra.mxu0 0.0
    %476 = vmatprep.subr.mxu0 0.0
    %477 = vmatpush2.msra.mxu0 0.0
    %478 = vmatprep.subr.mxu0 0.0
    %479 = vmatpush2.msra.mxu0 0.0
    %480 = vmatprep.subr.mxu0 0.0
    %481 = vmatpush2.msra.mxu0 0.0
    %482 = vmatprep.subr.mxu0 0.0
    %483 = vmatpush2.msra.mxu0 0.0
    %484 = vmatprep.subr.mxu0 0.0
    %485 = vmatpush2.msra.mxu0 0.0
    %486 = vmatprep.subr.mxu0 0.0
    %487 = vmatpush2.msra.mxu0 0.0
    %488 = vmatprep.subr.mxu0 0.0
    %489 = vmatpush2.msra.mxu0 0.0
    %490 = vmatprep.mubr.f32.mxu0 0.0
    %491 = vmatmul.mubr.f32.gmra.mxu0 %v424
    %v492 = vpop.f32.mrf.mxu0
    %v493 = vadd.f32 %v422, %v492
    %v494 = vpop.f32.mrf.mxu0
    %495 = vdwg.mxu0
    %v496 = vxor.u32 %v493, 2147483648
    %v497 = vmul.f32 %v496, 1.442695
    %v498 = vpow.pop %v497
    %v499 = vadd.f32 %v498, 1.0
    %v500 = vrcp.pop %v499
    %v501 = vmul.f32 1.0, %v500
    %v502 = vtanh.pop %v493
    %v503 = vmul.f32 %v501, %v412
    %505 = vrot.lane.b32.xlu0 %v502, 32
    %v506 = vpop.permute.xlu0 %505
    %v508 = vmul.f32 %v501, %v506
    %510 = vrot.lane.b32.xlu0 %v508, 32
    %v511 = vpop.permute.xlu0 %510
    %v513 = vadd.f32 %v503, %v511
    %v514 = vtanh.pop %v513
    %516 = vrot.lane.b32.xlu0 %v514, 32
    %v517 = vpop.permute.xlu0 %516
    %v519 = vmul.f32 %v501, %v517
    %521 = vrot.lane.b32.xlu0 %v519, 64
    %v522 = vpop.permute.xlu0 %521
    %v523 = vrot.slane %v121, 6
    %v525 = vsel %vm219, %v522, 0
    %527 = vmatprep.subr.mxu0 0.0
    %528 = vmatpush1.msra.mxu0 0.0
    %529 = vmatprep.subr.mxu0 0.0
    %530 = vmatpush1.msra.mxu0 0.0
    %531 = vmatprep.subr.mxu0 0.0
    %532 = vmatpush1.msra.mxu0 0.0
    %533 = vmatprep.subr.mxu0 0.0
    %534 = vmatpush1.msra.mxu0 0.0
    %535 = vmatprep.subr.mxu0 0.0
    %536 = vmatpush1.msra.mxu0 0.0
    %537 = vmatprep.subr.mxu0 0.0
    %538 = vmatpush1.msra.mxu0 0.0
    %539 = vmatprep.subr.mxu0 0.0
    %540 = vmatpush1.msra.mxu0 0.0
    %541 = vmatprep.subr.mxu0 0.0
    %542 = vmatpush1.msra.mxu0 0.0
    %543 = vmatprep.subr.mxu0 0.0
    %544 = vmatpush1.msra.mxu0 0.0
    %545 = vmatprep.subr.mxu0 0.0
    %546 = vmatpush1.msra.mxu0 0.0
    %547 = vmatprep.subr.mxu0 0.0
    %548 = vmatpush1.msra.mxu0 0.0
    %549 = vmatprep.subr.mxu0 0.0
    %550 = vmatpush1.msra.mxu0 0.0
    %551 = vmatprep.subr.mxu0 0.0
    %552 = vmatpush1.msra.mxu0 %v218
    %553 = vmatprep.subr.mxu0 0.0
    %554 = vmatpush1.msra.mxu0 %v217
    %555 = vmatprep.subr.mxu0 0.0
    %556 = vmatpush1.msra.mxu0 %v216
    %557 = vmatprep.subr.mxu0 0.0
    %558 = vmatpush1.msra.mxu0 %v215
    %559 = vmatprep.subr.mxu0 0.0
    %560 = vmatpush2.msra.mxu0 0.0
    %561 = vmatprep.subr.mxu0 0.0
    %562 = vmatpush2.msra.mxu0 0.0
    %563 = vmatprep.subr.mxu0 0.0
    %564 = vmatpush2.msra.mxu0 0.0
    %565 = vmatprep.subr.mxu0 0.0
    %566 = vmatpush2.msra.mxu0 0.0
    %567 = vmatprep.subr.mxu0 0.0
    %568 = vmatpush2.msra.mxu0 0.0
    %569 = vmatprep.subr.mxu0 0.0
    %570 = vmatpush2.msra.mxu0 0.0
    %571 = vmatprep.subr.mxu0 0.0
    %572 = vmatpush2.msra.mxu0 0.0
    %573 = vmatprep.subr.mxu0 0.0
    %574 = vmatpush2.msra.mxu0 0.0
    %575 = vmatprep.subr.mxu0 0.0
    %576 = vmatpush2.msra.mxu0 0.0
    %577 = vmatprep.subr.mxu0 0.0
    %578 = vmatpush2.msra.mxu0 0.0
    %579 = vmatprep.subr.mxu0 0.0
    %580 = vmatpush2.msra.mxu0 0.0
    %581 = vmatprep.subr.mxu0 0.0
    %582 = vmatpush2.msra.mxu0 0.0
    %583 = vmatprep.subr.mxu0 0.0
    %584 = vmatpush2.msra.mxu0 0.0
    %585 = vmatprep.subr.mxu0 0.0
    %586 = vmatpush2.msra.mxu0 0.0
    %587 = vmatprep.subr.mxu0 0.0
    %588 = vmatpush2.msra.mxu0 0.0
    %589 = vmatprep.subr.mxu0 0.0
    %590 = vmatpush2.msra.mxu0 0.0
    %591 = vmatprep.mubr.f32.mxu0 0.0
    %592 = vmatmul.mubr.f32.gmra.mxu0 %v525
    %v593 = vpop.f32.mrf.mxu0
    %v594 = vadd.f32 %v523, %v593
    %v595 = vpop.f32.mrf.mxu0
    %596 = vdwg.mxu0
    %v597 = vxor.u32 %v594, 2147483648
    %v598 = vmul.f32 %v597, 1.442695
    %v599 = vpow.pop %v598
    %v600 = vadd.f32 %v599, 1.0
    %v601 = vrcp.pop %v600
    %v602 = vmul.f32 1.0, %v601
    %v603 = vtanh.pop %v594
    %v604 = vmul.f32 %v602, %v513
    %606 = vrot.lane.b32.xlu0 %v603, 32
    %v607 = vpop.permute.xlu0 %606
    %v609 = vmul.f32 %v602, %v607
    %611 = vrot.lane.b32.xlu0 %v609, 32
    %v612 = vpop.permute.xlu0 %611
    %v614 = vadd.f32 %v604, %v612
    %v615 = vtanh.pop %v614
    %617 = vrot.lane.b32.xlu0 %v615, 32
    %v618 = vpop.permute.xlu0 %617
    %v620 = vmul.f32 %v602, %v618
    %622 = vrot.lane.b32.xlu0 %v620, 64
    %v623 = vpop.permute.xlu0 %622
    %v624 = vsel %vm219, %v623, 0
    %626 = vmatprep.subr.mxu0 0.0
    %627 = vmatpush1.msra.mxu0 0.0
    %628 = vmatprep.subr.mxu0 0.0
    %629 = vmatpush1.msra.mxu0 0.0
    %630 = vmatprep.subr.mxu0 0.0
    %631 = vmatpush1.msra.mxu0 0.0
    %632 = vmatprep.subr.mxu0 0.0
    %633 = vmatpush1.msra.mxu0 0.0
    %634 = vmatprep.subr.mxu0 0.0
    %635 = vmatpush1.msra.mxu0 0.0
    %636 = vmatprep.subr.mxu0 0.0
    %637 = vmatpush1.msra.mxu0 0.0
    %638 = vmatprep.subr.mxu0 0.0
    %639 = vmatpush1.msra.mxu0 0.0
    %640 = vmatprep.subr.mxu0 0.0
    %641 = vmatpush1.msra.mxu0 0.0
    %642 = vmatprep.subr.mxu0 0.0
    %643 = vmatpush1.msra.mxu0 0.0
    %644 = vmatprep.subr.mxu0 0.0
    %645 = vmatpush1.msra.mxu0 0.0
    %646 = vmatprep.subr.mxu0 0.0
    %647 = vmatpush1.msra.mxu0 0.0
    %648 = vmatprep.subr.mxu0 0.0
    %649 = vmatpush1.msra.mxu0 0.0
    %650 = vmatprep.subr.mxu0 0.0
    %651 = vmatpush1.msra.mxu0 %v218
    %652 = vmatprep.subr.mxu0 0.0
    %653 = vmatpush1.msra.mxu0 %v217
    %654 = vmatprep.subr.mxu0 0.0
    %655 = vmatpush1.msra.mxu0 %v216
    %656 = vmatprep.subr.mxu0 0.0
    %657 = vmatpush1.msra.mxu0 %v215
    %658 = vmatprep.subr.mxu0 0.0
    %659 = vmatpush2.msra.mxu0 0.0
    %660 = vmatprep.subr.mxu0 0.0
    %661 = vmatpush2.msra.mxu0 0.0
    %662 = vmatprep.subr.mxu0 0.0
    %663 = vmatpush2.msra.mxu0 0.0
    %664 = vmatprep.subr.mxu0 0.0
    %665 = vmatpush2.msra.mxu0 0.0
    %666 = vmatprep.subr.mxu0 0.0
    %667 = vmatpush2.msra.mxu0 0.0
    %668 = vmatprep.subr.mxu0 0.0
    %669 = vmatpush2.msra.mxu0 0.0
    %670 = vmatprep.subr.mxu0 0.0
    %671 = vmatpush2.msra.mxu0 0.0
    %672 = vmatprep.subr.mxu0 0.0
    %673 = vmatpush2.msra.mxu0 0.0
    %674 = vmatprep.subr.mxu0 0.0
    %675 = vmatpush2.msra.mxu0 0.0
    %676 = vmatprep.subr.mxu0 0.0
    %677 = vmatpush2.msra.mxu0 0.0
    %678 = vmatprep.subr.mxu0 0.0
    %679 = vmatpush2.msra.mxu0 0.0
    %680 = vmatprep.subr.mxu0 0.0
    %681 = vmatpush2.msra.mxu0 0.0
    %682 = vmatprep.subr.mxu0 0.0
    %683 = vmatpush2.msra.mxu0 0.0
    %684 = vmatprep.subr.mxu0 0.0
    %685 = vmatpush2.msra.mxu0 0.0
    %686 = vmatprep.subr.mxu0 0.0
    %687 = vmatpush2.msra.mxu0 0.0
    %688 = vmatprep.subr.mxu0 0.0
    %689 = vmatpush2.msra.mxu0 0.0
    %690 = vmatprep.mubr.f32.mxu0 0.0
    %691 = vmatmul.mubr.f32.gmra.mxu0 %v624
    %v692 = vpop.f32.mrf.mxu0
    %v693 = vadd.f32 %v126, %v692
    %v694 = vpop.f32.mrf.mxu0
    %695 = vdwg.mxu0
    %v696 = vxor.u32 %v693, 2147483648
    %v697 = vmul.f32 %v696, 1.442695
    %v698 = vpow.pop %v697
    %v699 = vadd.f32 %v698, 1.0
    %v700 = vrcp.pop %v699
    %v701 = vmul.f32 1.0, %v700
    %v702 = vtanh.pop %v693
    %v703 = vmul.f32 %v701, %v614
    %705 = vrot.lane.b32.xlu0 %v702, 32
    %v706 = vpop.permute.xlu0 %705
    %v708 = vmul.f32 %v701, %v706
    %710 = vrot.lane.b32.xlu0 %v708, 32
    %v711 = vpop.permute.xlu0 %710
    %v713 = vadd.f32 %v703, %v711
    %v714 = vtanh.pop %v713
    %716 = vrot.lane.b32.xlu0 %v714, 32
    %v717 = vpop.permute.xlu0 %716
    %v719 = vmul.f32 %v701, %v717
    %721 = vrot.lane.b32.xlu0 %v719, 64
    %v722 = vpop.permute.xlu0 %721
    %v724 = vrot.slane %v126, 2
    %v726 = vsel %vm219, %v722, 0
    %728 = vmatprep.subr.mxu0 0.0
    %729 = vmatpush1.msra.mxu0 0.0
    %730 = vmatprep.subr.mxu0 0.0
    %731 = vmatpush1.msra.mxu0 0.0
    %732 = vmatprep.subr.mxu0 0.0
    %733 = vmatpush1.msra.mxu0 0.0
    %734 = vmatprep.subr.mxu0 0.0
    %735 = vmatpush1.msra.mxu0 0.0
    %736 = vmatprep.subr.mxu0 0.0
    %737 = vmatpush1.msra.mxu0 0.0
    %738 = vmatprep.subr.mxu0 0.0
    %739 = vmatpush1.msra.mxu0 0.0
    %740 = vmatprep.subr.mxu0 0.0
    %741 = vmatpush1.msra.mxu0 0.0
    %742 = vmatprep.subr.mxu0 0.0
    %743 = vmatpush1.msra.mxu0 0.0
    %744 = vmatprep.subr.mxu0 0.0
    %745 = vmatpush1.msra.mxu0 0.0
    %746 = vmatprep.subr.mxu0 0.0
    %747 = vmatpush1.msra.mxu0 0.0
    %748 = vmatprep.subr.mxu0 0.0
    %749 = vmatpush1.msra.mxu0 0.0
    %750 = vmatprep.subr.mxu0 0.0
    %751 = vmatpush1.msra.mxu0 0.0
    %752 = vmatprep.subr.mxu0 0.0
    %753 = vmatpush1.msra.mxu0 %v218
    %754 = vmatprep.subr.mxu0 0.0
    %755 = vmatpush1.msra.mxu0 %v217
    %756 = vmatprep.subr.mxu0 0.0
    %757 = vmatpush1.msra.mxu0 %v216
    %758 = vmatprep.subr.mxu0 0.0
    %759 = vmatpush1.msra.mxu0 %v215
    %760 = vmatprep.subr.mxu0 0.0
    %761 = vmatpush2.msra.mxu0 0.0
    %762 = vmatprep.subr.mxu0 0.0
    %763 = vmatpush2.msra.mxu0 0.0
    %764 = vmatprep.subr.mxu0 0.0
    %765 = vmatpush2.msra.mxu0 0.0
    %766 = vmatprep.subr.mxu0 0.0
    %767 = vmatpush2.msra.mxu0 0.0
    %768 = vmatprep.subr.mxu0 0.0
    %769 = vmatpush2.msra.mxu0 0.0
    %770 = vmatprep.subr.mxu0 0.0
    %771 = vmatpush2.msra.mxu0 0.0
    %772 = vmatprep.subr.mxu0 0.0
    %773 = vmatpush2.msra.mxu0 0.0
    %774 = vmatprep.subr.mxu0 0.0
    %775 = vmatpush2.msra.mxu0 0.0
    %776 = vmatprep.subr.mxu0 0.0
    %777 = vmatpush2.msra.mxu0 0.0
    %778 = vmatprep.subr.mxu0 0.0
    %779 = vmatpush2.msra.mxu0 0.0
    %780 = vmatprep.subr.mxu0 0.0
    %781 = vmatpush2.msra.mxu0 0.0
    %782 = vmatprep.subr.mxu0 0.0
    %783 = vmatpush2.msra.mxu0 0.0
    %784 = vmatprep.subr.mxu0 0.0
    %785 = vmatpush2.msra.mxu0 0.0
    %786 = vmatprep.subr.mxu0 0.0
    %787 = vmatpush2.msra.mxu0 0.0
    %788 = vmatprep.subr.mxu0 0.0
    %789 = vmatpush2.msra.mxu0 0.0
    %790 = vmatprep.subr.mxu0 0.0
    %791 = vmatpush2.msra.mxu0 0.0
    %792 = vmatprep.mubr.f32.mxu0 0.0
    %793 = vmatmul.mubr.f32.gmra.mxu0 %v726
    %v794 = vpop.f32.mrf.mxu0
    %v795 = vadd.f32 %v724, %v794
    %v796 = vpop.f32.mrf.mxu0
    %797 = vdwg.mxu0
    %v798 = vxor.u32 %v795, 2147483648
    %v799 = vmul.f32 %v798, 1.442695
    %v800 = vpow.pop %v799
    %v801 = vadd.f32 %v800, 1.0
    %v802 = vrcp.pop %v801
    %v803 = vmul.f32 1.0, %v802
    %v804 = vtanh.pop %v795
    %v805 = vmul.f32 %v803, %v713
    %807 = vrot.lane.b32.xlu0 %v804, 32
    %v808 = vpop.permute.xlu0 %807
    %v810 = vmul.f32 %v803, %v808
    %812 = vrot.lane.b32.xlu0 %v810, 32
    %v813 = vpop.permute.xlu0 %812
    %v815 = vadd.f32 %v805, %v813
    %v816 = vtanh.pop %v815
    %818 = vrot.lane.b32.xlu0 %v816, 32
    %v819 = vpop.permute.xlu0 %818
    %v821 = vmul.f32 %v803, %v819
    %823 = vrot.lane.b32.xlu0 %v821, 64
    %v824 = vpop.permute.xlu0 %823
    %v825 = vrot.slane %v126, 4
    %v827 = vsel %vm219, %v824, 0
    %829 = vmatprep.subr.mxu0 0.0
    %830 = vmatpush1.msra.mxu0 0.0
    %831 = vmatprep.subr.mxu0 0.0
    %832 = vmatpush1.msra.mxu0 0.0
    %833 = vmatprep.subr.mxu0 0.0
    %834 = vmatpush1.msra.mxu0 0.0
    %835 = vmatprep.subr.mxu0 0.0
    %836 = vmatpush1.msra.mxu0 0.0
    %837 = vmatprep.subr.mxu0 0.0
    %838 = vmatpush1.msra.mxu0 0.0
    %839 = vmatprep.subr.mxu0 0.0
    %840 = vmatpush1.msra.mxu0 0.0
    %841 = vmatprep.subr.mxu0 0.0
    %842 = vmatpush1.msra.mxu0 0.0
    %843 = vmatprep.subr.mxu0 0.0
    %844 = vmatpush1.msra.mxu0 0.0
    %845 = vmatprep.subr.mxu0 0.0
    %846 = vmatpush1.msra.mxu0 0.0
    %847 = vmatprep.subr.mxu0 0.0
    %848 = vmatpush1.msra.mxu0 0.0
    %849 = vmatprep.subr.mxu0 0.0
    %850 = vmatpush1.msra.mxu0 0.0
    %851 = vmatprep.subr.mxu0 0.0
    %852 = vmatpush1.msra.mxu0 0.0
    %853 = vmatprep.subr.mxu0 0.0
    %854 = vmatpush1.msra.mxu0 %v218
    %855 = vmatprep.subr.mxu0 0.0
    %856 = vmatpush1.msra.mxu0 %v217
    %857 = vmatprep.subr.mxu0 0.0
    %858 = vmatpush1.msra.mxu0 %v216
    %859 = vmatprep.subr.mxu0 0.0
    %860 = vmatpush1.msra.mxu0 %v215
    %861 = vmatprep.subr.mxu0 0.0
    %862 = vmatpush2.msra.mxu0 0.0
    %863 = vmatprep.subr.mxu0 0.0
    %864 = vmatpush2.msra.mxu0 0.0
    %865 = vmatprep.subr.mxu0 0.0
    %866 = vmatpush2.msra.mxu0 0.0
    %867 = vmatprep.subr.mxu0 0.0
    %868 = vmatpush2.msra.mxu0 0.0
    %869 = vmatprep.subr.mxu0 0.0
    %870 = vmatpush2.msra.mxu0 0.0
    %871 = vmatprep.subr.mxu0 0.0
    %872 = vmatpush2.msra.mxu0 0.0
    %873 = vmatprep.subr.mxu0 0.0
    %874 = vmatpush2.msra.mxu0 0.0
    %875 = vmatprep.subr.mxu0 0.0
    %876 = vmatpush2.msra.mxu0 0.0
    %877 = vmatprep.subr.mxu0 0.0
    %878 = vmatpush2.msra.mxu0 0.0
    %879 = vmatprep.subr.mxu0 0.0
    %880 = vmatpush2.msra.mxu0 0.0
    %881 = vmatprep.subr.mxu0 0.0
    %882 = vmatpush2.msra.mxu0 0.0
    %883 = vmatprep.subr.mxu0 0.0
    %884 = vmatpush2.msra.mxu0 0.0
    %885 = vmatprep.subr.mxu0 0.0
    %886 = vmatpush2.msra.mxu0 0.0
    %887 = vmatprep.subr.mxu0 0.0
    %888 = vmatpush2.msra.mxu0 0.0
    %889 = vmatprep.subr.mxu0 0.0
    %890 = vmatpush2.msra.mxu0 0.0
    %891 = vmatprep.subr.mxu0 0.0
    %892 = vmatpush2.msra.mxu0 0.0
    %893 = vmatprep.mubr.f32.mxu0 0.0
    %894 = vmatmul.mubr.f32.gmra.mxu0 %v827
    %v895 = vpop.f32.mrf.mxu0
    %v896 = vadd.f32 %v825, %v895
    %v897 = vpop.f32.mrf.mxu0
    %898 = vdwg.mxu0
    %v899 = vxor.u32 %v896, 2147483648
    %v900 = vmul.f32 %v899, 1.442695
    %v901 = vpow.pop %v900
    %v902 = vadd.f32 %v901, 1.0
    %v903 = vrcp.pop %v902
    %v904 = vmul.f32 1.0, %v903
    %v905 = vtanh.pop %v896
    %v906 = vmul.f32 %v904, %v815
    %908 = vrot.lane.b32.xlu0 %v905, 32
    %v909 = vpop.permute.xlu0 %908
    %v911 = vmul.f32 %v904, %v909
    %913 = vrot.lane.b32.xlu0 %v911, 32
    %v914 = vpop.permute.xlu0 %913
    %v916 = vadd.f32 %v906, %v914
    %v917 = vtanh.pop %v916
    %919 = vrot.lane.b32.xlu0 %v917, 32
    %v920 = vpop.permute.xlu0 %919
    %v922 = vmul.f32 %v904, %v920
    %924 = vrot.lane.b32.xlu0 %v922, 64
    %v925 = vpop.permute.xlu0 %924
    %v926 = vrot.slane %v126, 6
    %v928 = vsel %vm219, %v925, 0
    %930 = vmatprep.subr.mxu0 0.0
    %931 = vmatpush1.msra.mxu0 0.0
    %932 = vmatprep.subr.mxu0 0.0
    %933 = vmatpush1.msra.mxu0 0.0
    %934 = vmatprep.subr.mxu0 0.0
    %935 = vmatpush1.msra.mxu0 0.0
    %936 = vmatprep.subr.mxu0 0.0
    %937 = vmatpush1.msra.mxu0 0.0
    %938 = vmatprep.subr.mxu0 0.0
    %939 = vmatpush1.msra.mxu0 0.0
    %940 = vmatprep.subr.mxu0 0.0
    %941 = vmatpush1.msra.mxu0 0.0
    %942 = vmatprep.subr.mxu0 0.0
    %943 = vmatpush1.msra.mxu0 0.0
    %944 = vmatprep.subr.mxu0 0.0
    %945 = vmatpush1.msra.mxu0 0.0
    %946 = vmatprep.subr.mxu0 0.0
    %947 = vmatpush1.msra.mxu0 0.0
    %948 = vmatprep.subr.mxu0 0.0
    %949 = vmatpush1.msra.mxu0 0.0
    %950 = vmatprep.subr.mxu0 0.0
    %951 = vmatpush1.msra.mxu0 0.0
    %952 = vmatprep.subr.mxu0 0.0
    %953 = vmatpush1.msra.mxu0 0.0
    %954 = vmatprep.subr.mxu0 0.0
    %955 = vmatpush1.msra.mxu0 %v218
    %956 = vmatprep.subr.mxu0 0.0
    %957 = vmatpush1.msra.mxu0 %v217
    %958 = vmatprep.subr.mxu0 0.0
    %959 = vmatpush1.msra.mxu0 %v216
    %960 = vmatprep.subr.mxu0 0.0
    %961 = vmatpush1.msra.mxu0 %v215
    %962 = vmatprep.subr.mxu0 0.0
    %963 = vmatpush2.msra.mxu0 0.0
    %964 = vmatprep.subr.mxu0 0.0
    %965 = vmatpush2.msra.mxu0 0.0
    %966 = vmatprep.subr.mxu0 0.0
    %967 = vmatpush2.msra.mxu0 0.0
    %968 = vmatprep.subr.mxu0 0.0
    %969 = vmatpush2.msra.mxu0 0.0
    %970 = vmatprep.subr.mxu0 0.0
    %971 = vmatpush2.msra.mxu0 0.0
    %972 = vmatprep.subr.mxu0 0.0
    %973 = vmatpush2.msra.mxu0 0.0
    %974 = vmatprep.subr.mxu0 0.0
    %975 = vmatpush2.msra.mxu0 0.0
    %976 = vmatprep.subr.mxu0 0.0
    %977 = vmatpush2.msra.mxu0 0.0
    %978 = vmatprep.subr.mxu0 0.0
    %979 = vmatpush2.msra.mxu0 0.0
    %980 = vmatprep.subr.mxu0 0.0
    %981 = vmatpush2.msra.mxu0 0.0
    %982 = vmatprep.subr.mxu0 0.0
    %983 = vmatpush2.msra.mxu0 0.0
    %984 = vmatprep.subr.mxu0 0.0
    %985 = vmatpush2.msra.mxu0 0.0
    %986 = vmatprep.subr.mxu0 0.0
    %987 = vmatpush2.msra.mxu0 0.0
    %988 = vmatprep.subr.mxu0 0.0
    %989 = vmatpush2.msra.mxu0 0.0
    %990 = vmatprep.subr.mxu0 0.0
    %991 = vmatpush2.msra.mxu0 0.0
    %992 = vmatprep.subr.mxu0 0.0
    %993 = vmatpush2.msra.mxu0 0.0
    %994 = vmatprep.mubr.f32.mxu0 0.0
    %995 = vmatmul.mubr.f32.gmra.mxu0 %v928
    %v996 = vpop.f32.mrf.mxu0
    %v997 = vadd.f32 %v926, %v996
    %v998 = vpop.f32.mrf.mxu0
    %999 = vdwg.mxu0
    %v1000 = vxor.u32 %v997, 2147483648
    %v1001 = vmul.f32 %v1000, 1.442695
    %v1002 = vpow.pop %v1001
    %v1003 = vadd.f32 %v1002, 1.0
    %v1004 = vrcp.pop %v1003
    %v1005 = vmul.f32 1.0, %v1004
    %v1006 = vtanh.pop %v997
    %v1007 = vmul.f32 %v1005, %v916
    %1009 = vrot.lane.b32.xlu0 %v1006, 32
    %v1010 = vpop.permute.xlu0 %1009
    %v1012 = vmul.f32 %v1005, %v1010
    %1014 = vrot.lane.b32.xlu0 %v1012, 32
    %v1015 = vpop.permute.xlu0 %1014
    %v1017 = vadd.f32 %v1007, %v1015
    %v1018 = vtanh.pop %v1017
    %1020 = vrot.lane.b32.xlu0 %v1018, 32
    %v1021 = vpop.permute.xlu0 %1020
    %v1023 = vmul.f32 %v1005, %v1021
    %v1024 = vld [vmem:[%s7] sm:$0xff]
    %v1025 = vld [vmem:[%s7 + $0x8] sm:$0xff]
    %v1026 = vld [vmem:[%s7 + $0x10] sm:$0xff]
    %v1027 = vld [vmem:[%s7 + $0x18] sm:$0xff]
    %v1028 = vld [vmem:[%s8] sm:$0x1]
    %v1030 = vlaneseq
    %v1031 = vshrl.u32 %v1030, 7
    %v1032 = vsub.s32 0, %v1031
    %v1033 = vrot.slane %v1028, %v1032
    %1036 = vrot.lane.b32.xlu0 %v1023, 64
    %v1037 = vpop.permute.xlu0 %1036
    %v1038 = vsel %vm219, %v1037, 0
    %1040 = vmatprep.subr.mxu0 0.0
    %1041 = vmatpush1.msra.mxu0 0.0
    %1042 = vmatprep.subr.mxu0 0.0
    %1043 = vmatpush1.msra.mxu0 0.0
    %1044 = vmatprep.subr.mxu0 0.0
    %1045 = vmatpush1.msra.mxu0 0.0
    %1046 = vmatprep.subr.mxu0 0.0
    %1047 = vmatpush1.msra.mxu0 0.0
    %1048 = vmatprep.subr.mxu0 0.0
    %1049 = vmatpush1.msra.mxu0 0.0
    %1050 = vmatprep.subr.mxu0 0.0
    %1051 = vmatpush1.msra.mxu0 0.0
    %1052 = vmatprep.subr.mxu0 0.0
    %1053 = vmatpush1.msra.mxu0 0.0
    %1054 = vmatprep.subr.mxu0 0.0
    %1055 = vmatpush1.msra.mxu0 0.0
    %1056 = vmatprep.subr.mxu0 0.0
    %1057 = vmatpush1.msra.mxu0 0.0
    %1058 = vmatprep.subr.mxu0 0.0
    %1059 = vmatpush1.msra.mxu0 0.0
    %1060 = vmatprep.subr.mxu0 0.0
    %1061 = vmatpush1.msra.mxu0 0.0
    %1062 = vmatprep.subr.mxu0 0.0
    %1063 = vmatpush1.msra.mxu0 0.0
    %1064 = vmatprep.subr.mxu0 0.0
    %1065 = vmatpush1.msra.mxu0 %v1027
    %1066 = vmatprep.subr.mxu0 0.0
    %1067 = vmatpush1.msra.mxu0 %v1026
    %1068 = vmatprep.subr.mxu0 0.0
    %1069 = vmatpush1.msra.mxu0 %v1025
    %1070 = vmatprep.subr.mxu0 0.0
    %1071 = vmatpush1.msra.mxu0 %v1024
    %1072 = vmatprep.subr.mxu0 0.0
    %1073 = vmatpush2.msra.mxu0 0.0
    %1074 = vmatprep.subr.mxu0 0.0
    %1075 = vmatpush2.msra.mxu0 0.0
    %1076 = vmatprep.subr.mxu0 0.0
    %1077 = vmatpush2.msra.mxu0 0.0
    %1078 = vmatprep.subr.mxu0 0.0
    %1079 = vmatpush2.msra.mxu0 0.0
    %1080 = vmatprep.subr.mxu0 0.0
    %1081 = vmatpush2.msra.mxu0 0.0
    %1082 = vmatprep.subr.mxu0 0.0
    %1083 = vmatpush2.msra.mxu0 0.0
    %1084 = vmatprep.subr.mxu0 0.0
    %1085 = vmatpush2.msra.mxu0 0.0
    %1086 = vmatprep.subr.mxu0 0.0
    %1087 = vmatpush2.msra.mxu0 0.0
    %1088 = vmatprep.subr.mxu0 0.0
    %1089 = vmatpush2.msra.mxu0 0.0
    %1090 = vmatprep.subr.mxu0 0.0
    %1091 = vmatpush2.msra.mxu0 0.0
    %1092 = vmatprep.subr.mxu0 0.0
    %1093 = vmatpush2.msra.mxu0 0.0
    %1094 = vmatprep.subr.mxu0 0.0
    %1095 = vmatpush2.msra.mxu0 0.0
    %1096 = vmatprep.subr.mxu0 0.0
    %1097 = vmatpush2.msra.mxu0 0.0
    %1098 = vmatprep.subr.mxu0 0.0
    %1099 = vmatpush2.msra.mxu0 0.0
    %1100 = vmatprep.subr.mxu0 0.0
    %1101 = vmatpush2.msra.mxu0 0.0
    %1102 = vmatprep.subr.mxu0 0.0
    %1103 = vmatpush2.msra.mxu0 0.0
    %1104 = vmatprep.mubr.f32.mxu0 0.0
    %1105 = vmatmul.mubr.f32.gmra.mxu0 %v1038
    %v1106 = vpop.f32.mrf.mxu0
    %v1107 = vadd.f32 %v1033, %v1106
    %v1108 = vpop.f32.mrf.mxu0
    %1109 = vdwg.mxu0
    %vm1110 = vcmask 9216
    %1111 = vst.msk [vmem:[#allocation2] sm:$0x3] %vm1110, %v1107
    // Predicated region
    $region38: #{tpu_custom_call.1} parent=1 // pred_check
      _
    $region39: #{tpu_custom_call.1} parent=1 // pred_check_branch
      %1113 = sbr.rel (0) target = $region41
    $region40: #{tpu_custom_call.1} parent=1 // pred_region
      %s1115 = ssub.s32 32, 32
      %1116 = vsyncadd [#allocation3], %s1115
      %s1118 = sshll.u32 [#allocation2], 4
      %s1119 = int_to_ptr.vmem [resolvable:$true] %s1118
      %1121 = dma.vmem_to_hbm [thread:$0]  %s1119, 32, %s9, [#allocation3]
    $region41: #{tpu_custom_call.1} parent=1 // pred_fallthru
      _
    // Predicated region
    $region42: #{tpu_custom_call.1} parent=1 // pred_check
      _
    $region43: #{tpu_custom_call.1} parent=1 // pred_check_branch
      %1123 = sbr.rel (0) target = $region45
    $region44: #{tpu_custom_call.1} parent=1 // pred_region
      %1124 = dma.done [#allocation3], 32
    $region45: #{tpu_custom_call.1} parent=1 // pred_fallthru
      _
    %1125 = vsyncpa [#allocation3], 1

</llo_original>
